<compile_context>
chip_gen: v5e
topology: v5e:2x2
jax: 0.10.0
libtpu: 0.0.40
codegen_flags: <defaults>
</compile_context>

<pallas_src>
import jax
import jax.numpy as jnp
from jax import lax
from jax.experimental import pallas as pl
from jax.experimental.pallas import tpu as pltpu

LN_EPS = 1e-5  # torch.nn.LayerNorm default

_VMEM_LIMIT_BYTES = 64 * 1024 * 1024   # raised scoped-VMEM limit (defaults: 16 MiB v5e, 32 MiB v6e/v7x)
_TILE_VMEM_BUDGET = 32 * 1024 * 1024   # conservative per-step budget -> safe on v7x (64 MiB physical)


def _pick_tile_rows(rows, dim, dtype_bytes):
    """Largest row tile whose double-buffered blocks + f32 temporaries fit the VMEM budget."""
    # per-step VMEM ~ 2*(in block + out block) + ~3 f32 temporaries = (4*b + 12) * tile_rows * dim
    per_row = (4 * dtype_bytes + 3 * 4) * max(dim, 1)
    tile = 8
    for cand in (1024, 512, 256, 128, 64, 32, 16, 8):
        if cand * per_row <= _TILE_VMEM_BUDGET:
            tile = cand
            break
    if rows <= tile:
        return rows  # single block == full extent (always a legal block shape)
    return tile      # multiple of 8; partial final block handled by masked writeback


def _ln_block(x_f32, w_f32, b_f32):
    """LayerNorm over the last axis of an f32 (tile_rows, dim) block. Single-pass stats."""
    dim = x_f32.shape[-1]
    inv_dim = jnp.float32(1.0 / dim)
    s = jnp.sum(x_f32, axis=-1, keepdims=True)
    sq = jnp.sum(x_f32 * x_f32, axis=-1, keepdims=True)
    mean = s * inv_dim
    var = jnp.maximum(sq * inv_dim - mean * mean, 0.0)
    inv = lax.rsqrt(var + LN_EPS)
    return (x_f32 - mean) * inv * w_f32 + b_f32


def _layernorm_kernel(x_ref, w_ref, b_ref, o_ref):
    y = _ln_block(x_ref[...].astype(jnp.float32), w_ref[...], b_ref[...])
    o_ref[...] = y.astype(o_ref.dtype)


def _fused_ln_matmul_kernel(x_ref, w_ref, b_ref, p_ref, o_ref):
    """LayerNorm on the (tile_rows, dim) block, fed directly into an MXU matmul."""
    y = _ln_block(x_ref[...].astype(jnp.float32), w_ref[...], b_ref[...])
    o_ref[...] = jnp.dot(
        y.astype(p_ref.dtype), p_ref[...], preferred_element_type=jnp.float32
    ).astype(o_ref.dtype)


def layernorm_pallas(x, weight, bias, *, tile_rows=None):
    """LayerNorm over the last dim of an arbitrary-rank array (standalone kernel)."""
    orig_shape = x.shape
    dim = orig_shape[-1]
    rows = 1
    for s in orig_shape[:-1]:
        rows *= s
    x2d = x.reshape(rows, dim)

    if tile_rows is None:
        tile_rows = _pick_tile_rows(rows, dim, x.dtype.itemsize)

    w2d = weight.astype(jnp.float32).reshape(1, dim)  # hoist f32 cast out of the kernel
    b2d = bias.astype(jnp.float32).reshape(1, dim)

    out = pl.pallas_call(
        _layernorm_kernel,
        out_shape=jax.ShapeDtypeStruct((rows, dim), x.dtype),
        grid_spec=pltpu.PrefetchScalarGridSpec(
            num_scalar_prefetch=0,
            grid=(pl.cdiv(rows, tile_rows),),
            in_specs=[
                pl.BlockSpec((tile_rows, dim), lambda i: (i, 0)),
                pl.BlockSpec((1, dim), lambda i: (0, 0)),
                pl.BlockSpec((1, dim), lambda i: (0, 0)),
            ],
            out_specs=pl.BlockSpec((tile_rows, dim), lambda i: (i, 0)),
        ),
        compiler_params=pltpu.CompilerParams(
            dimension_semantics=("parallel",),
            vmem_limit_bytes=_VMEM_LIMIT_BYTES,
        ),
    )(x2d, w2d, b2d)
    return out.reshape(orig_shape)


def prenorm_linear_pallas(x, norm_w, norm_b, proj, *, tile_rows=None, tile_n=None):
    """Fused LayerNorm(x) @ proj: the normalized activation never hits HBM."""
    orig_shape = x.shape
    dim = orig_shape[-1]
    n_out = proj.shape[-1]
    rows = 1
    for s in orig_shape[:-1]:
        rows *= s
    x2d = x.reshape(rows, dim)

    if tile_rows is None:
        tile_rows = _pick_tile_rows(rows, dim, x.dtype.itemsize)
    if tile_n is None:
        tile_n = n_out if n_out <= 512 else 512
    if tile_n != n_out and tile_n % 128 != 0:   # lane-dim legality: multiple of 128 or full
        tile_n = n_out

    w2d = norm_w.astype(jnp.float32).reshape(1, dim)
    b2d = norm_b.astype(jnp.float32).reshape(1, dim)

    out = pl.pallas_call(
        _fused_ln_matmul_kernel,
        out_shape=jax.ShapeDtypeStruct((rows, n_out), x.dtype),
        grid_spec=pltpu.PrefetchScalarGridSpec(
            num_scalar_prefetch=0,
            grid=(pl.cdiv(rows, tile_rows), pl.cdiv(n_out, tile_n)),
            in_specs=[
                pl.BlockSpec((tile_rows, dim), lambda i, j: (i, 0)),
                pl.BlockSpec((1, dim), lambda i, j: (0, 0)),
                pl.BlockSpec((1, dim), lambda i, j: (0, 0)),
                pl.BlockSpec((dim, tile_n), lambda i, j: (0, j)),
            ],
            out_specs=pl.BlockSpec((tile_rows, tile_n), lambda i, j: (i, j)),
        ),
        compiler_params=pltpu.CompilerParams(
            dimension_semantics=("parallel", "parallel"),
            vmem_limit_bytes=_VMEM_LIMIT_BYTES,
        ),
    )(x2d, w2d, b2d, proj)
    return out.reshape(orig_shape[:-1] + (n_out,))


def prenorm_forward(x, fn, norm_w, norm_b, ctx_w=None, ctx_b=None, **kwargs):
    """Mirrors PreNorm.forward for an arbitrary wrapped fn (standalone LN kernels)."""
    xn = layernorm_pallas(x, norm_w, norm_b)
    if ctx_w is not None:
        context = kwargs["context"]
        kwargs = dict(kwargs)
        kwargs["context"] = layernorm_pallas(context, ctx_w, ctx_b)
    return fn(xn, **kwargs)
    # TODO(synk): for dims far below 128, pack multiple rows into the 128-lane axis to avoid
    # masked partial stores; current layout keeps the full `dim` on the lane axis.


if __name__ == "__main__":
    key = jax.random.PRNGKey(0)
    k1, k2, k3, k4, k5, k6, k7, k8 = jax.random.split(key, 8)

    batch, seq, dim = 2, 8, 32
    ctx_seq, context_dim = 8, 16

    x = jax.random.normal(k1, (batch, seq, dim), dtype=jnp.float32)
    context = jax.random.normal(k2, (batch, ctx_seq, context_dim), dtype=jnp.float32)

    norm_w = jnp.ones((dim,), jnp.float32) + 0.1 * jax.random.normal(k3, (dim,))
    norm_b = 0.1 * jax.random.normal(k4, (dim,))
    ctx_w = jnp.ones((context_dim,), jnp.float32) + 0.1 * jax.random.normal(k5, (context_dim,))
    ctx_b = 0.1 * jax.random.normal(k6, (context_dim,))

    # `fn` = whatever module PreNorm wraps (attention / FF); here a small linear mix.
    W = 0.02 * jax.random.normal(k7, (dim, dim))
    Wc = 0.02 * jax.random.normal(k8, (context_dim, dim))

    def fn(x, context=None):
        out = x @ W
        if context is not None:
            out = out + context @ Wc
        return out

    # Path 1: generic PreNorm (standalone LN kernels feeding an arbitrary fn).
    out_generic = prenorm_forward(
        x, fn, norm_w, norm_b, ctx_w=ctx_w, ctx_b=ctx_b, context=context
    )
    # Path 2: fused LN + matmul kernels (recommended when fn's first op is a projection).
    out_fused = prenorm_linear_pallas(x, norm_w, norm_b, W) + prenorm_linear_pallas(
        context, ctx_w, ctx_b, Wc
    )
    out_generic, out_fused = jax.block_until_ready((out_generic, out_fused))

    # reference in plain JAX (same math as torch.nn.LayerNorm)
    def ln_ref(v, w, b):
        m = jnp.mean(v, axis=-1, keepdims=True)
        var = jnp.mean((v - m) ** 2, axis=-1, keepdims=True)
        return (v - m) / jnp.sqrt(var + LN_EPS) * w + b

    ref = fn(ln_ref(x, norm_w, norm_b), context=ln_ref(context, ctx_w, ctx_b))

    assert out_generic.shape == (batch, seq, dim)
    assert out_fused.shape == (batch, seq, dim)
    assert jnp.allclose(out_generic, ref, atol=1e-5, rtol=1e-5)
    # fused path does its matmul on the MXU inside the kernel; allow small precision delta
    assert jnp.allclose(out_fused, ref, atol=1e-3, rtol=1e-3)

    print("KERNEL_OK")
</pallas_src>

<mosaic_0001>
module attributes {stable_mosaic.version = 11 : i64} {
  func.func @_layernorm_kernel(%arg0: i32, %arg1: memref<16x32xf32, #tpu.memory_space<vmem>>, %arg2: memref<1x32xf32, #tpu.memory_space<vmem>>, %arg3: memref<1x32xf32, #tpu.memory_space<vmem>>, %arg4: memref<16x32xf32, #tpu.memory_space<vmem>>) attributes {dimension_semantics = [#tpu.dimension_semantics<parallel>], iteration_bounds = array<i64: 1>, scalar_prefetch = 0 : i64, scratch_operands = 0 : i64, tpu.core_type = #tpu.core_type<tc>, window_params = [{transform_indices = @transform_0, window_bounds = array<i64: 16, 32>}, {pipeline_mode = #tpu.pipeline_mode<synchronous>, transform_indices = @transform_1, window_bounds = array<i64: 1, 32>}, {pipeline_mode = #tpu.pipeline_mode<synchronous>, transform_indices = @transform_2, window_bounds = array<i64: 1, 32>}, {transform_indices = @transform_3, window_bounds = array<i64: 16, 32>}]} {
    %c0 = arith.constant 0 : index
    %c0_0 = arith.constant 0 : index
    %0 = vector.load %arg1[%c0, %c0_0] : memref<16x32xf32, #tpu.memory_space<vmem>>, vector<16x32xf32>
    %c0_1 = arith.constant 0 : index
    %c0_2 = arith.constant 0 : index
    %1 = vector.load %arg2[%c0_1, %c0_2] : memref<1x32xf32, #tpu.memory_space<vmem>>, vector<1x32xf32>
    %c0_3 = arith.constant 0 : index
    %c0_4 = arith.constant 0 : index
    %2 = vector.load %arg3[%c0_3, %c0_4] : memref<1x32xf32, #tpu.memory_space<vmem>>, vector<1x32xf32>
    %cst = arith.constant dense<0.000000e+00> : vector<16xf32>
    %3 = vector.multi_reduction <add>, %0, %cst [1] : vector<16x32xf32> to vector<16xf32>
    %4 = vector.shape_cast %3 : vector<16xf32> to vector<16x1xf32>
    %5 = arith.mulf %0, %0 : vector<16x32xf32>
    %cst_5 = arith.constant dense<0.000000e+00> : vector<16xf32>
    %6 = vector.multi_reduction <add>, %5, %cst_5 [1] : vector<16x32xf32> to vector<16xf32>
    %7 = vector.shape_cast %6 : vector<16xf32> to vector<16x1xf32>
    %cst_6 = arith.constant 3.125000e-02 : f32
    %8 = vector.broadcast %cst_6 : f32 to vector<16x1xf32>
    %9 = arith.mulf %4, %8 : vector<16x1xf32>
    %cst_7 = arith.constant 3.125000e-02 : f32
    %10 = vector.broadcast %cst_7 : f32 to vector<16x1xf32>
    %11 = arith.mulf %7, %10 : vector<16x1xf32>
    %12 = arith.mulf %9, %9 : vector<16x1xf32>
    %13 = arith.subf %11, %12 : vector<16x1xf32>
    %cst_8 = arith.constant 0.000000e+00 : f32
    %14 = vector.broadcast %cst_8 : f32 to vector<16x1xf32>
    %15 = arith.maximumf %13, %14 : vector<16x1xf32>
    %cst_9 = arith.constant 9.99999974E-6 : f32
    %16 = vector.broadcast %cst_9 : f32 to vector<16x1xf32>
    %17 = arith.addf %15, %16 : vector<16x1xf32>
    %18 = math.rsqrt %17 : vector<16x1xf32>
    %19 = vector.broadcast %9 : vector<16x1xf32> to vector<16x32xf32>
    %20 = arith.subf %0, %19 : vector<16x32xf32>
    %21 = vector.broadcast %18 : vector<16x1xf32> to vector<16x32xf32>
    %22 = arith.mulf %20, %21 : vector<16x32xf32>
    %23 = vector.broadcast %1 : vector<1x32xf32> to vector<16x32xf32>
    %24 = arith.mulf %22, %23 : vector<16x32xf32>
    %25 = vector.broadcast %2 : vector<1x32xf32> to vector<16x32xf32>
    %26 = arith.addf %24, %25 : vector<16x32xf32>
    %c0_10 = arith.constant 0 : index
    %c0_11 = arith.constant 0 : index
    %27 = vector.load %arg4[%c0_10, %c0_11] : memref<16x32xf32, #tpu.memory_space<vmem>>, vector<16x32xf32>
    tpu.vector_store %arg4[%c0_10, %c0_11], %26 {strides = array<i32>} : memref<16x32xf32, #tpu.memory_space<vmem>>, vector<16x32xf32>,
    return
  }
  func.func @transform_0(%arg0: i32) -> (i32, i32) {
    %c0_i32 = arith.constant 0 : i32
    %c0_i32_0 = arith.constant 0 : i32
    return %arg0, %c0_i32 : i32, i32
  }
  func.func @transform_1(%arg0: i32) -> (i32, i32) {
    %c0_i32 = arith.constant 0 : i32
    %c0_i32_0 = arith.constant 0 : i32
    %c0_i32_1 = arith.constant 0 : i32
    return %c0_i32, %c0_i32_0 : i32, i32
  }
  func.func @transform_2(%arg0: i32) -> (i32, i32) {
    %c0_i32 = arith.constant 0 : i32
    %c0_i32_0 = arith.constant 0 : i32
    %c0_i32_1 = arith.constant 0 : i32
    return %c0_i32, %c0_i32_0 : i32, i32
  }
  func.func @transform_3(%arg0: i32) -> (i32, i32) {
    %c0_i32 = arith.constant 0 : i32
    %c0_i32_0 = arith.constant 0 : i32
    return %arg0, %c0_i32 : i32, i32
  }
}

</mosaic_0001>

<llo_original>
// kernel: tpu_custom_call.1
$region0: #{tpu_custom_call.1}
  #allocation0 [shape = 'u32[]', space=smem, size = 0x4, offset = 0x4, fixed_abs, tag = 'smem constant byte address 0x4 - core index']
  #allocation1 [shape = 'u32[72,128]{1,0:T(1,128)}', space=vmem, size = 0x9000, scoped, tag = 'internal scratch']
  %s0 = inlined_call_operand.hbm [shape: f32[16,32], index: 0, kind: input, shape index: {}]
  %s1 = inlined_call_operand.hbm [shape: f32[1,32], index: 1, kind: input, shape index: {}]
  %s2 = inlined_call_operand.vmem [shape: f32[1,32], index: 2, kind: input, shape index: {}]
  %s3 = inlined_call_operand.hbm [shape: f32[16,32], index: 3, kind: output, shape index: {}]
  %s4 = sld [smem:[#allocation0]]
  $region30: #{tpu_custom_call.1} parent=0
    _
  %s6 = ssub.s32 1, %s4
  %s7 = scalar_select 0, %s6, %s4
  $region1: #{tpu_custom_call.1} parent=0
    #allocation2 [shape = 'u8[8192]{0}', space=vmem, size = 0x2000, scoped, tag = 'input window, operand 0, single buffered']
    #allocation3 [shape = 's32[1]{0}', space=sflag, size = 0x4, scoped, tag = 'scoped memory for tpu_custom_call.1']
    #allocation4 [shape = 's32[1]{0}', space=sflag, size = 0x4, scoped, tag = 'scoped memory for tpu_custom_call.1']
    #allocation5 [shape = 'u8[512]{0}', space=vmem, size = 0x400, scoped, tag = 'input window, operand 1, single buffered']
    #allocation6 [shape = 's32[1]{0}', space=sflag, size = 0x4, scoped, tag = 'scoped memory for tpu_custom_call.1']
    #allocation7 [shape = 'u8[8192]{0}', space=vmem, size = 0x2000, scoped, tag = 'output window, operand 0, single buffered']
    %8 = vsyncpa [#allocation3], 0
    %9 = vsyncpa [#allocation6], 0
    %10 = vsyncpa [#allocation4], 0
    // Predicated region
    $region2: #{tpu_custom_call.1} parent=1 // pred_check
      _
    $region3: #{tpu_custom_call.1} parent=1 // pred_check_branch
      %12 = sbr.rel (0) target = $region5
    $region4: #{tpu_custom_call.1} parent=1 // pred_region
      %14 = vsyncadd [#allocation3], 0
      %s15 = sshll.u32 %s0, 4
      %s16 = int_to_ptr.hbm [resolvable:$true] %s15
      %s17 = sshll.u32 [#allocation2], 4
      %s18 = int_to_ptr.vmem [resolvable:$true] %s17
      %23 = dma.hbm_to_vmem [thread:$0]  %s16, 256, %s18, [#allocation3], 128, 128, 8
    $region5: #{tpu_custom_call.1} parent=1 // pred_fallthru
      _
    // Predicated region
    $region6: #{tpu_custom_call.1} parent=1 // pred_check
      _
    $region7: #{tpu_custom_call.1} parent=1 // pred_check_branch
      %25 = sbr.rel (0) target = $region9
    $region8: #{tpu_custom_call.1} parent=1 // pred_region
      %27 = vsyncadd [#allocation6], 0
      %s29 = sshll.u32 %s1, 4
      %s30 = int_to_ptr.hbm [resolvable:$true] %s29
      %s31 = sshll.u32 [#allocation5], 4
      %s32 = int_to_ptr.vmem [resolvable:$true] %s31
      %34 = dma.hbm_to_vmem [thread:$0]  %s30, 16, %s32, [#allocation6]
    $region9: #{tpu_custom_call.1} parent=1 // pred_fallthru
      _
    // Predicated region
    $region10: #{tpu_custom_call.1} parent=1 // pred_check
      _
    $region11: #{tpu_custom_call.1} parent=1 // pred_check_branch
      %36 = sbr.rel (0) target = $region13
    $region12: #{tpu_custom_call.1} parent=1 // pred_region
      _
    $region13: #{tpu_custom_call.1} parent=1 // pred_fallthru
      _
    // Predicated region
    $region14: #{tpu_custom_call.1} parent=1 // pred_check
      _
    $region15: #{tpu_custom_call.1} parent=1 // pred_check_branch
      %38 = sbr.rel (0) target = $region17
    $region16: #{tpu_custom_call.1} parent=1 // pred_region
      %40 = dma.done [#allocation3], 256
    $region17: #{tpu_custom_call.1} parent=1 // pred_fallthru
      _
    // Predicated region
    $region18: #{tpu_custom_call.1} parent=1 // pred_check
      _
    $region19: #{tpu_custom_call.1} parent=1 // pred_check_branch
      %42 = sbr.rel (0) target = $region21
    $region20: #{tpu_custom_call.1} parent=1 // pred_region
      %44 = dma.done [#allocation6], 16
    $region21: #{tpu_custom_call.1} parent=1 // pred_fallthru
      _
    %v45 = vld [vmem:[#allocation2] sm:$0xff]
    %v46 = vld [vmem:[#allocation2 + $0x8] sm:$0xff]
    %v47 = vld [vmem:[#allocation5] sm:$0x1]
    %v48 = vld [vmem:[%s2] sm:$0x1]
    %vm49 = vcmask 261120
    %v50 = vsel %vm49, %v45, 0.0
    %51 = vadd.xlane.f32.xlu0 %v50
    %v52 = vpop.xlane.xlu0 %51
    %v53 = vsel %vm49, %v46, 0.0
    %54 = vadd.xlane.f32.xlu0 %v53
    %v55 = vpop.xlane.xlu0 %54
    %v56 = vmul.f32 %v45, %v45
    %v57 = vmul.f32 %v46, %v46
    %v58 = vsel %vm49, %v56, 0.0
    %59 = vadd.xlane.f32.xlu0 %v58
    %v60 = vpop.xlane.xlu0 %59
    %v61 = vsel %vm49, %v57, 0.0
    %62 = vadd.xlane.f32.xlu0 %v61
    %v63 = vpop.xlane.xlu0 %62
    %v64 = vmul.f32 %v52, 0.03125
    %v65 = vmul.f32 %v55, 0.03125
    %v66 = vmul.f32 %v60, 0.03125
    %v67 = vmul.f32 %v63, 0.03125
    %v68 = vmul.f32 %v64, %v64
    %v69 = vmul.f32 %v65, %v65
    %v70 = vsub.f32 %v66, %v68
    %v71 = vsub.f32 %v67, %v69
    %v72 = vmax.f32 %v70, 0.0
    %v73 = vmax.f32 %v71, 0.0
    %v74 = vadd.f32 %v72, 1e-05
    %v75 = vadd.f32 %v73, 1e-05
    %v76 = vrsqrt.pop %v74
    %v77 = vmul.f32 %v76, %v74
    %v78 = vmul.f32 %v77, %v76
    %v79 = vmul.f32 0.5, %v78
    %v80 = vsub.f32 1.5, %v79
    %v81 = vmul.f32 %v76, %v80
    %vm82 = vweird.f32 %v74
    %vm83 = vweird.f32 %v76
    %vm84 = vmor %vm82, %vm83
    %v85 = vsel %vm84, %v76, %v81
    %v86 = vrsqrt.pop %v75
    %v87 = vmul.f32 %v86, %v75
    %v88 = vmul.f32 %v87, %v86
    %v89 = vmul.f32 0.5, %v88
    %v90 = vsub.f32 1.5, %v89
    %v91 = vmul.f32 %v86, %v90
    %vm92 = vweird.f32 %v75
    %vm93 = vweird.f32 %v86
    %vm94 = vmor %vm92, %vm93
    %v95 = vsel %vm94, %v86, %v91
    %v96 = vsub.f32 %v45, %v64
    %v97 = vsub.f32 %v46, %v65
    %v98 = vmul.f32 %v96, %v85
    %v99 = vmul.f32 %v97, %v95
    %v101 = vperm.slane %v47, 0
    %v103 = vmul.f32 %v98, %v101
    %v104 = vmul.f32 %v99, %v101
    %v106 = vperm.slane %v48, 0
    %v108 = vadd.f32 %v103, %v106
    %v109 = vadd.f32 %v104, %v106
    %110 = vst.msk [vmem:[#allocation7] sm:$0xff] %vm49, %v108
    %111 = vst.msk [vmem:[#allocation7 + $0x8] sm:$0xff] %vm49, %v109
    // Predicated region
    $region22: #{tpu_custom_call.1} parent=1 // pred_check
      _
    $region23: #{tpu_custom_call.1} parent=1 // pred_check_branch
      %113 = sbr.rel (0) target = $region25
    $region24: #{tpu_custom_call.1} parent=1 // pred_region
      %115 = vsyncadd [#allocation4], 0
      %s116 = sshll.u32 [#allocation7], 4
      %s117 = int_to_ptr.vmem [resolvable:$true] %s116
      %s118 = sshll.u32 %s3, 4
      %s119 = int_to_ptr.hbm [resolvable:$true] %s118
      %124 = dma.vmem_to_hbm [thread:$0]  %s117, 256, %s119, [#allocation4], 128, 128, 8
    $region25: #{tpu_custom_call.1} parent=1 // pred_fallthru
      _
    // Predicated region
    $region26: #{tpu_custom_call.1} parent=1 // pred_check
      _
    $region27: #{tpu_custom_call.1} parent=1 // pred_check_branch
      %126 = sbr.rel (0) target = $region29
    $region28: #{tpu_custom_call.1} parent=1 // pred_region
      %128 = dma.done [#allocation4], 256
    $region29: #{tpu_custom_call.1} parent=1 // pred_fallthru
      _
    %129 = vsyncpa [#allocation3], 1
    %130 = vsyncpa [#allocation6], 1
    %131 = vsyncpa [#allocation4], 1

</llo_original>
